<compile_context>
chip_gen: v6e
topology: v6e:2x2x1
jax: 0.10.0
libtpu: 0.0.40
codegen_flags: <defaults>
</compile_context>

<pallas_src>
import jax
import jax.numpy as jnp
from jax.experimental import pallas as pl
from jax.experimental.pallas import tpu as pltpu

_LANE = 128
# 4096 x 128 f32 = 2 MiB per tile; (in + out) x double-buffer = 8 MiB resident.
_ROW_BLOCK_CAP = 4096


def _copy_kernel(x_ref, o_ref):
    # Abstract base class: no defined computation.  Identity copy of the
    # lane-dense VMEM tile (subclass hot path would live here).
    o_ref[...] = x_ref[...]


def _identity_passthrough(x):
    """Identity through a Pallas kernel: lane-dense 2-D tiles, io-aliased."""
    total = x.size
    if total % _LANE == 0:
        rows, cols = total // _LANE, _LANE
    else:
        # TODO(synk): sizes not divisible by 128 fall back to one full block.
        rows, cols = total // x.shape[-1], x.shape[-1]

    x2 = x.reshape(rows, cols)

    if cols == _LANE:
        block_rows = min(rows, _ROW_BLOCK_CAP)   # full array or multiple of 8
    else:
        block_rows = rows                        # single full block
    grid = (pl.cdiv(rows, block_rows),)

    y2 = pl.pallas_call(
        _copy_kernel,
        grid=grid,
        in_specs=[pl.BlockSpec((block_rows, cols), lambda r: (r, 0))],
        out_specs=pl.BlockSpec((block_rows, cols), lambda r: (r, 0)),
        out_shape=jax.ShapeDtypeStruct((rows, cols), x.dtype),
        input_output_aliases={0: 0},
        compiler_params=pltpu.CompilerParams(
            dimension_semantics=("parallel",),
        ),
    )(x2)
    return y2.reshape(x.shape)


def base_sequence_model_forward(x_input, x_history):
    """Pallas 'forward' for the abstract BaseSequenceModel.

    x_input:   (B, T, H)
    x_history: (B, T_hist, H)
    Returns both tensors unchanged (identity).  Each tensor gets its own
    lane-dense pallas_call so the two sequence lengths tile independently.
    """
    B, T, H = x_input.shape
    Bh, Th, Hh = x_history.shape
    assert B == Bh and H == Hh
    return _identity_passthrough(x_input), _identity_passthrough(x_history)


if __name__ == "__main__":
    key = jax.random.PRNGKey(0)
    k1, k2 = jax.random.split(key)

    B, T, H = 2, 8, 32        # small shapes consistent with a sequence model
    T_hist = 8

    x_input = jax.random.normal(k1, (B, T, H), dtype=jnp.float32)
    x_history = jax.random.normal(k2, (B, T_hist, H), dtype=jnp.float32)

    fwd = jax.jit(base_sequence_model_forward)
    y_in, y_hist = fwd(x_input, x_history)
    jax.block_until_ready((y_in, y_hist))

    # Sanity check: identity semantics (the only well-defined behavior of the
    # abstract base class's data path).
    assert y_in.shape == x_input.shape and y_hist.shape == x_history.shape
    assert jnp.allclose(y_in, x_input)
    assert jnp.allclose(y_hist, x_history)

    print("KERNEL_OK")
</pallas_src>

<mosaic_0001>
module attributes {stable_mosaic.version = 11 : i64} {
  func.func @_copy_kernel(%arg0: i32, %arg1: memref<4x128xf32, #tpu.memory_space<vmem>>, %arg2: memref<4x128xf32, #tpu.memory_space<vmem>>) attributes {dimension_semantics = [#tpu.dimension_semantics<parallel>], iteration_bounds = array<i64: 1>, scalar_prefetch = 0 : i64, scratch_operands = 0 : i64, tpu.core_type = #tpu.core_type<tc>, window_params = [{transform_indices = @transform_0, window_bounds = array<i64: 4, 128>}, {transform_indices = @transform_1, window_bounds = array<i64: 4, 128>}]} {
    %c0 = arith.constant 0 : index
    %c0_0 = arith.constant 0 : index
    %0 = vector.load %arg1[%c0, %c0_0] : memref<4x128xf32, #tpu.memory_space<vmem>>, vector<4x128xf32>
    %c0_1 = arith.constant 0 : index
    %c0_2 = arith.constant 0 : index
    %1 = vector.load %arg2[%c0_1, %c0_2] : memref<4x128xf32, #tpu.memory_space<vmem>>, vector<4x128xf32>
    tpu.vector_store %arg2[%c0_1, %c0_2], %0 {strides = array<i32>} : memref<4x128xf32, #tpu.memory_space<vmem>>, vector<4x128xf32>,
    return
  }
  func.func @transform_0(%arg0: i32) -> (i32, i32) {
    %c0_i32 = arith.constant 0 : i32
    %c0_i32_0 = arith.constant 0 : i32
    return %arg0, %c0_i32 : i32, i32
  }
  func.func @transform_1(%arg0: i32) -> (i32, i32) {
    %c0_i32 = arith.constant 0 : i32
    %c0_i32_0 = arith.constant 0 : i32
    return %arg0, %c0_i32 : i32, i32
  }
}

</mosaic_0001>

<llo_original>
// kernel: base_sequence_model_forward.2
$region0: #{base_sequence_model_forward.2}
  #allocation0 [shape = 'u32[]', space=smem, size = 0x4, offset = 0x4, fixed_abs, tag = 'smem constant byte address 0x4 - core index']
  #allocation1 [shape = 'u32[144,128]{1,0:T(1,128)}', space=vmem, size = 0x12000, scoped, tag = 'internal scratch']
  %s0 = inlined_call_operand.vmem [shape: f32[4,128], index: 0, kind: input, shape index: {}, may-alias: {0,1}]
  %s1 = inlined_call_operand.vmem [shape: f32[4,128], index: 1, kind: output, shape index: {}, may-alias: {0,1}]
  %s2 = sld [smem:[#allocation0]]
  $region14: #{base_sequence_model_forward.2} parent=0
    _
  %s4 = ssub.s32 1, %s2
  %s5 = scalar_select 0, %s4, %s2
  // Predicated region
  $region2: #{base_sequence_model_forward.2} parent=0 // pred_check
    _
  $region3: #{base_sequence_model_forward.2} parent=0 // pred_check_branch
    %7 = sbr.rel (0) target = $region5
  $region4: #{base_sequence_model_forward.2} parent=0 // pred_region
    _
  $region5: #{base_sequence_model_forward.2} parent=0 // pred_fallthru
    _
  %v8 = vld [vmem:[%s0] sm:$0xf]
  %9 = vst [vmem:[%s1] sm:$0xf] %v8
  // Predicated region
  $region6: #{base_sequence_model_forward.2} parent=0 // pred_check
    _
  $region7: #{base_sequence_model_forward.2} parent=0 // pred_check_branch
    %11 = sbr.rel (0) target = $region9
  $region8: #{base_sequence_model_forward.2} parent=0 // pred_region
    _
  $region9: #{base_sequence_model_forward.2} parent=0 // pred_fallthru
    _
  // Predicated region
  $region10: #{base_sequence_model_forward.2} parent=0 // pred_check
    _
  $region11: #{base_sequence_model_forward.2} parent=0 // pred_check_branch
    %13 = sbr.rel (0) target = $region13
  $region12: #{base_sequence_model_forward.2} parent=0 // pred_region
    _
  $region13: #{base_sequence_model_forward.2} parent=0 // pred_fallthru
    _

</llo_original>
